<compile_context>
chip_gen: v6e
topology: v6e:2x2x1
jax: 0.10.0
libtpu: 0.0.40
codegen_flags: <defaults>
</compile_context>

<pallas_src>
import functools

import jax
import jax.numpy as jnp
from jax.experimental import pallas as pl
from jax.experimental.pallas import tpu as pltpu


def _round_up(x, m):
    return ((x + m - 1) // m) * m


def mgc_kernel(x_ref, w_ref, m_ref, a_ref, b_ref, o_ref, *, fout_p):
    # Per grid step:
    #   x_ref: (TB, N, Fin)   batch tile of inputs
    #   w_ref: (Fin, 2*Fp)    [W0 | W1], Fout zero-padded to Fp (lane-dense)
    #   m_ref: (N, 2*Fp)      [diag(A)·M | M]  (diagonal term folded into modulation)
    #   a_ref: (N, N)         A * (1 - E)  (off-diagonal part, symmetric)
    #   b_ref: (1, Fp)        bias, zero-padded
    #   o_ref: (TB, N, Fp)
    tb, n, fin = x_ref.shape

    # Fused weight matmul: one MXU call produces [h0 | h1] for the whole tile.
    x2 = x_ref[...].reshape(tb * n, fin)                         # leading-dim collapse (free)
    h = jnp.dot(x2, w_ref[...], preferred_element_type=jnp.float32)   # (TB*N, 2*Fp)
    h = h.reshape(tb, n, 2 * fout_p)

    # Single VPU multiply: first half already carries diag(A), second half is plain M.
    mh = m_ref[...][None, :, :] * h
    mh0 = mh[:, :, :fout_p]          # == diag(A) · (M ⊙ h0)
    mh1 = mh[:, :, fout_p:]          # ==            M ⊙ h1

    # Off-diagonal graph aggregation: batched matmul with the small resident (N, N) adjacency.
    a_b = jnp.broadcast_to(a_ref[...][None, :, :], (tb, n, n))
    agg = jnp.einsum("bnk,bkg->bng", a_b, mh1,
                     preferred_element_type=jnp.float32)

    o_ref[...] = (mh0 + agg + b_ref[...][None, :, :]).astype(o_ref.dtype)


def modulated_graph_conv(X, W, M, adj, adj2, bias=None, *, target_rows=512):
    """Pallas ModulatedGraphConv forward.
    X:(B,N,Fin), W:(2,Fin,Fout), M:(N,Fout), adj/adj2:(N,N), bias:(Fout,) -> (B,N,Fout)
    """
    B, N, Fin = X.shape
    Fout = W.shape[2]
    f32 = jnp.float32

    # ---- one-off, batch-independent graph / parameter preprocessing (tiny XLA ops) ----
    A = adj.astype(f32) + adj2.astype(f32)
    A = (A.T + A) * 0.5
    d = jnp.diagonal(A)                                   # (N,)
    a_off = A * (1.0 - jnp.eye(N, dtype=f32))             # A * (1 - E), symmetric

    Fp = _round_up(Fout, 128)                             # lane-dense output columns
    pad = Fp - Fout
    w0 = jnp.pad(W[0].astype(f32), ((0, 0), (0, pad)))
    w1 = jnp.pad(W[1].astype(f32), ((0, 0), (0, pad)))
    w_cat = jnp.concatenate([w0, w1], axis=-1)            # (Fin, 2*Fp)

    m_pad = jnp.pad(M.astype(f32), ((0, 0), (0, pad)))    # (N, Fp)
    m_cat = jnp.concatenate([d[:, None] * m_pad, m_pad], axis=-1)   # (N, 2*Fp)

    if bias is None:
        b_pad = jnp.zeros((1, Fp), f32)
    else:
        b_pad = jnp.pad(bias.astype(f32).reshape(1, Fout), ((0, 0), (0, pad)))

    # Note: Fin is left unpadded (block dim == full array dim is legal); X is the large
    # streaming operand and zero-padding its contraction dim would only inflate HBM traffic.

    # ---- batch tiling: ~target_rows rows per grid step, params stay VMEM-resident ----
    tb = max(1, min(B, target_rows // max(N, 1)))
    while B % tb:
        tb -= 1
    grid = (B // tb,)

    x = X.astype(f32)

    blk_bytes = 4 * (tb * N * Fin + Fin * 2 * Fp + N * 2 * Fp + N * N + Fp + tb * N * Fp)
    vmem_limit = int(min(max(4 * blk_bytes, 16 * 2 ** 20), 32 * 2 ** 20))

    out_p = pl.pallas_call(
        functools.partial(mgc_kernel, fout_p=Fp),
        out_shape=jax.ShapeDtypeStruct((B, N, Fp), X.dtype),
        grid=grid,
        in_specs=[
            pl.BlockSpec((tb, N, Fin), lambda i: (i, 0, 0)),     # streamed per batch tile
            pl.BlockSpec((Fin, 2 * Fp), lambda i: (0, 0)),       # resident
            pl.BlockSpec((N, 2 * Fp), lambda i: (0, 0)),         # resident
            pl.BlockSpec((N, N), lambda i: (0, 0)),              # resident
            pl.BlockSpec((1, Fp), lambda i: (0, 0)),             # resident
        ],
        out_specs=pl.BlockSpec((tb, N, Fp), lambda i: (i, 0, 0)),
        compiler_params=pltpu.CompilerParams(
            dimension_semantics=("parallel",),
            vmem_limit_bytes=vmem_limit),
    )(x, w_cat, m_cat, a_off, b_pad)

    return out_p[..., :Fout].astype(X.dtype)


def modulated_graph_conv_ref(X, W, M, adj, adj2, bias):
    """Pure-JAX reference mirroring the PyTorch module forward."""
    h0 = jnp.matmul(X, W[0], precision="highest")
    h1 = jnp.matmul(X, W[1], precision="highest")
    A = adj + adj2
    A = (A.T + A) / 2.0
    E = jnp.eye(A.shape[0], dtype=A.dtype)
    out = (jnp.matmul(A * E, M * h0, precision="highest")
           + jnp.matmul(A * (1.0 - E), M * h1, precision="highest"))
    return out + bias.reshape(1, 1, -1)


if __name__ == "__main__":
    key = jax.random.PRNGKey(0)
    k_x, k_a, k_w, k_m, k_b = jax.random.split(key, 5)

    B, N, Fin, Fout = 8, 16, 32, 32

    X = jax.random.normal(k_x, (B, N, Fin), dtype=jnp.float32)

    # adjacency with self loops (module symmetrizes internally, so any adj is fine)
    A_raw = (jax.random.uniform(k_a, (N, N)) > 0.7).astype(jnp.float32)
    adj = A_raw + jnp.eye(N, dtype=jnp.float32)
    adj2 = jnp.full((N, N), 1e-6, dtype=jnp.float32)     # nn.init.constant_(adj2, 1e-6)

    # xavier-style params (gain 1.414) and nn.Linear-style bias
    gain = 1.414
    std_w = gain * (2.0 / (Fin + Fout)) ** 0.5
    W = std_w * jax.random.normal(k_w, (2, Fin, Fout), dtype=jnp.float32)
    std_m = gain * (2.0 / (N + Fout)) ** 0.5
    M = std_m * jax.random.normal(k_m, (N, Fout), dtype=jnp.float32)
    stdv = 1.0 / (Fout ** 0.5)
    bias = jax.random.uniform(k_b, (Fout,), dtype=jnp.float32, minval=-stdv, maxval=stdv)

    # small target_rows so the demo exercises a multi-step pipelined grid (tb=4 -> grid=(2,))
    out = modulated_graph_conv(X, W, M, adj, adj2, bias, target_rows=64)
    out = jax.block_until_ready(out)

    ref = modulated_graph_conv_ref(X, W, M, adj, adj2, bias)
    assert out.shape == (B, N, Fout)
    assert jnp.allclose(out, ref, atol=1e-3, rtol=1e-3), "mismatch vs reference"

    print("KERNEL_OK")
</pallas_src>

<mosaic_0001>
module attributes {stable_mosaic.version = 11 : i64} {
  func.func @mgc_kernel(%arg0: i32, %arg1: memref<4x16x32xf32, #tpu.memory_space<vmem>>, %arg2: memref<32x256xf32, #tpu.memory_space<vmem>>, %arg3: memref<16x256xf32, #tpu.memory_space<vmem>>, %arg4: memref<16x16xf32, #tpu.memory_space<vmem>>, %arg5: memref<1x128xf32, #tpu.memory_space<vmem>>, %arg6: memref<4x16x128xf32, #tpu.memory_space<vmem>>) attributes {dimension_semantics = [#tpu.dimension_semantics<parallel>], iteration_bounds = array<i64: 2>, scalar_prefetch = 0 : i64, scratch_operands = 0 : i64, tpu.core_type = #tpu.core_type<tc>, window_params = [{transform_indices = @transform_0, window_bounds = array<i64: 4, 16, 32>}, {pipeline_mode = #tpu.pipeline_mode<synchronous>, transform_indices = @transform_1, window_bounds = array<i64: 32, 256>}, {pipeline_mode = #tpu.pipeline_mode<synchronous>, transform_indices = @transform_2, window_bounds = array<i64: 16, 256>}, {pipeline_mode = #tpu.pipeline_mode<synchronous>, transform_indices = @transform_3, window_bounds = array<i64: 16, 16>}, {pipeline_mode = #tpu.pipeline_mode<synchronous>, transform_indices = @transform_4, window_bounds = array<i64: 1, 128>}, {transform_indices = @transform_5, window_bounds = array<i64: 4, 16, 128>}]} {
    %c0 = arith.constant 0 : index
    %c0_0 = arith.constant 0 : index
    %c0_1 = arith.constant 0 : index
    %0 = vector.load %arg1[%c0, %c0_0, %c0_1] : memref<4x16x32xf32, #tpu.memory_space<vmem>>, vector<4x16x32xf32>
    %1 = vector.shape_cast %0 : vector<4x16x32xf32> to vector<64x32xf32>
    %c0_2 = arith.constant 0 : index
    %c0_3 = arith.constant 0 : index
    %2 = vector.load %arg2[%c0_2, %c0_3] : memref<32x256xf32, #tpu.memory_space<vmem>>, vector<32x256xf32>
    %cst = arith.constant dense<0.000000e+00> : vector<64x256xf32>
    %3 = tpu.matmul %1, %2, %cst {dimension_numbers = #tpu.dot_dimension_numbers<[1], [0], [0], [1], [0, 0, 1, 1], [], []>} : vector<64x32xf32>, vector<32x256xf32>, vector<64x256xf32> -> vector<64x256xf32>
    %4 = vector.shape_cast %3 : vector<64x256xf32> to vector<4x16x256xf32>
    %c0_4 = arith.constant 0 : index
    %c0_5 = arith.constant 0 : index
    %5 = vector.load %arg3[%c0_4, %c0_5] : memref<16x256xf32, #tpu.memory_space<vmem>>, vector<16x256xf32>
    %6 = vector.shape_cast %5 : vector<16x256xf32> to vector<1x16x256xf32>
    %7 = vector.broadcast %6 : vector<1x16x256xf32> to vector<4x16x256xf32>
    %8 = arith.mulf %7, %4 : vector<4x16x256xf32>
    %9 = vector.extract_strided_slice %8 {offsets = [0, 0, 0], sizes = [4, 16, 128], strides = [1, 1, 1]} : vector<4x16x256xf32> to vector<4x16x128xf32>
    %10 = vector.extract_strided_slice %8 {offsets = [0, 0, 128], sizes = [4, 16, 128], strides = [1, 1, 1]} : vector<4x16x256xf32> to vector<4x16x128xf32>
    %c0_6 = arith.constant 0 : index
    %c0_7 = arith.constant 0 : index
    %11 = vector.load %arg4[%c0_6, %c0_7] : memref<16x16xf32, #tpu.memory_space<vmem>>, vector<16x16xf32>
    %12 = vector.shape_cast %11 : vector<16x16xf32> to vector<1x16x16xf32>
    %13 = vector.shape_cast %12 : vector<1x16x16xf32> to vector<1x16x16xf32>
    %14 = vector.broadcast %13 : vector<1x16x16xf32> to vector<4x16x16xf32>
    "tpu.trace_start"() <{level = 10 : i32, message = "bnk,bkg->bng"}> : () -> ()
    %cst_8 = arith.constant dense<0.000000e+00> : vector<4x16x128xf32>
    %15 = tpu.matmul %14, %10, %cst_8 {dimension_numbers = #tpu.dot_dimension_numbers<[2], [1], [1], [2], [0, 0, 0, 1, 1, 2], [0], [0]>} : vector<4x16x16xf32>, vector<4x16x128xf32>, vector<4x16x128xf32> -> vector<4x16x128xf32>
    "tpu.trace_stop"() : () -> ()
    %16 = arith.addf %9, %15 : vector<4x16x128xf32>
    %c0_9 = arith.constant 0 : index
    %c0_10 = arith.constant 0 : index
    %17 = vector.load %arg5[%c0_9, %c0_10] : memref<1x128xf32, #tpu.memory_space<vmem>>, vector<1x128xf32>
    %18 = vector.shape_cast %17 : vector<1x128xf32> to vector<1x1x128xf32>
    %19 = vector.broadcast %18 : vector<1x1x128xf32> to vector<4x16x128xf32>
    %20 = arith.addf %16, %19 : vector<4x16x128xf32>
    %c0_11 = arith.constant 0 : index
    %c0_12 = arith.constant 0 : index
    %c0_13 = arith.constant 0 : index
    %21 = vector.load %arg6[%c0_11, %c0_12, %c0_13] : memref<4x16x128xf32, #tpu.memory_space<vmem>>, vector<4x16x128xf32>
    tpu.vector_store %arg6[%c0_11, %c0_12, %c0_13], %20 {strides = array<i32>} : memref<4x16x128xf32, #tpu.memory_space<vmem>>, vector<4x16x128xf32>,
    return
  }
  func.func @transform_0(%arg0: i32) -> (i32, i32, i32) {
    %c0_i32 = arith.constant 0 : i32
    %c0_i32_0 = arith.constant 0 : i32
    %c0_i32_1 = arith.constant 0 : i32
    return %arg0, %c0_i32, %c0_i32_0 : i32, i32, i32
  }
  func.func @transform_1(%arg0: i32) -> (i32, i32) {
    %c0_i32 = arith.constant 0 : i32
    %c0_i32_0 = arith.constant 0 : i32
    %c0_i32_1 = arith.constant 0 : i32
    return %c0_i32, %c0_i32_0 : i32, i32
  }
  func.func @transform_2(%arg0: i32) -> (i32, i32) {
    %c0_i32 = arith.constant 0 : i32
    %c0_i32_0 = arith.constant 0 : i32
    %c0_i32_1 = arith.constant 0 : i32
    return %c0_i32, %c0_i32_0 : i32, i32
  }
  func.func @transform_3(%arg0: i32) -> (i32, i32) {
    %c0_i32 = arith.constant 0 : i32
    %c0_i32_0 = arith.constant 0 : i32
    %c0_i32_1 = arith.constant 0 : i32
    return %c0_i32, %c0_i32_0 : i32, i32
  }
  func.func @transform_4(%arg0: i32) -> (i32, i32) {
    %c0_i32 = arith.constant 0 : i32
    %c0_i32_0 = arith.constant 0 : i32
    %c0_i32_1 = arith.constant 0 : i32
    return %c0_i32, %c0_i32_0 : i32, i32
  }
  func.func @transform_5(%arg0: i32) -> (i32, i32, i32) {
    %c0_i32 = arith.constant 0 : i32
    %c0_i32_0 = arith.constant 0 : i32
    %c0_i32_1 = arith.constant 0 : i32
    return %arg0, %c0_i32, %c0_i32_0 : i32, i32, i32
  }
}

</mosaic_0001>

<llo_original>
// kernel: tpu_custom_call.1
$region0: #{tpu_custom_call.1}
  #allocation0 [shape = 'u32[]', space=smem, size = 0x4, offset = 0x4, fixed_abs, tag = 'smem constant byte address 0x4 - core index']
  #allocation1 [shape = 'u32[144,128]{1,0:T(1,128)}', space=vmem, size = 0x12000, scoped, tag = 'internal scratch']
  %s0 = inlined_call_operand.hbm [shape: f32[8,16,32], index: 0, kind: input, shape index: {}]
  %s1 = inlined_call_operand.hbm [shape: f32[32,256], index: 1, kind: input, shape index: {}]
  %s2 = inlined_call_operand.hbm [shape: f32[16,256], index: 2, kind: input, shape index: {}]
  %s3 = inlined_call_operand.hbm [shape: f32[16,16], index: 3, kind: input, shape index: {}]
  %s4 = inlined_call_operand.vmem [shape: f32[1,128], index: 4, kind: input, shape index: {}]
  %s5 = inlined_call_operand.hbm [shape: f32[8,16,128], index: 5, kind: output, shape index: {}]
  %s6 = sld [smem:[#allocation0]]
  $region69: #{tpu_custom_call.1} parent=0
    _
  %s8 = ssub.s32 1, %s6
  %s9 = scalar_select 0, %s8, %s6
  $region1: #{tpu_custom_call.1} parent=0
    #allocation2 [shape = 'u8[65536]{0}', space=vmem, size = 0x10000, scoped, tag = 'input window, operand 0']
    #allocation3 [shape = 's32[2]{0}', space=sflag, size = 0x8, scoped, tag = 'scoped memory for tpu_custom_call.1']
    #allocation4 [shape = 's32[2]{0}', space=sflag, size = 0x8, scoped, tag = 'scoped memory for tpu_custom_call.1']
    #allocation5 [shape = 'u8[32768]{0}', space=vmem, size = 0x8000, scoped, tag = 'input window, operand 1, single buffered']
    #allocation6 [shape = 's32[1]{0}', space=sflag, size = 0x4, scoped, tag = 'scoped memory for tpu_custom_call.1']
    #allocation7 [shape = 'u8[16384]{0}', space=vmem, size = 0x4000, scoped, tag = 'input window, operand 2, single buffered']
    #allocation8 [shape = 'u8[8192]{0}', space=vmem, size = 0x2000, scoped, tag = 'input window, operand 3, single buffered']
    #allocation9 [shape = 's32[1]{0}', space=sflag, size = 0x4, scoped, tag = 'scoped memory for tpu_custom_call.1']
    #allocation10 [shape = 'u8[65536]{0}', space=vmem, size = 0x10000, scoped, tag = 'output window, operand 0']
    %10 = vsyncpa [#allocation3], 0
    %s11 = scalar_lea.sflag [#allocation3], 1
    %12 = vsyncpa %s11, 0
    %13 = vsyncpa [#allocation6], 0
    %14 = vsyncpa [#allocation9], 0
    %15 = vsyncpa [#allocation4], 0
    %s16 = scalar_lea.sflag [#allocation4], 1
    %17 = vsyncpa %s16, 0
    loop: start=0, step=1, limit=4
    $region2: #{tpu_custom_call.1} parent=1 // loop_pre_header
      _
    $region3: #{tpu_custom_call.1} parent=1 // loop_header
      %s19 = sphi 0, %s23
      %p20 = scmp.ge.s32.totalorder %s19, 4
      %s29 = sphi 0, %s31
      %s32 = sphi 0, %s29
      %s33 = sphi 0, %s32
      %s49 = sphi 0, %s33
      %s53 = sphi 0, %s53
      %s55 = sphi 0, %s53
      %s56 = sphi 0, %s55
      %s70 = sphi 0, %s56
      %s74 = sphi 0, %s74
      %s76 = sphi 0, %s74
      %s77 = sphi 0, %s76
      %s91 = sphi 0, %s77
      %s95 = sphi 0, %s95
      %s97 = sphi 0, %s95
      %s98 = sphi 0, %s97
      %s112 = sphi 0, %s98
      %s116 = sphi 0, %s116
      %s118 = sphi 0, %s116
      %s119 = sphi 0, %s118
      %s133 = sphi 0, %s119
      %s139 = sphi 0, %s141
      %s142 = sphi 0, %s139
      %s143 = sphi 0, %s142
      %s159 = sphi 0, %s143
    $region4: #{tpu_custom_call.1} parent=1 // loop_header_branch
      %22 = sbr.rel (%p20) target = $region8
    $region5: #{tpu_custom_call.1} parent=1 // loop_body
      %s24 = ssub.s32 %s19, 1
      %s25 = ssub.s32 %s19, 2
      %s26 = sadd.s32 %s19, 1
      %s27 = ssub.s32 %s19, %s26
      %p28 = scmp.eq.s32.totalorder %s27, 0
      %s30 = sadd.s32 %s29, 1
      %s31 = scalar_select %p28, %s29, %s30
      %p34 = pneg %p28
      %p35 = scmp.eq.s32.totalorder %s19, 1
      %p36 = por %p34, %p35
      %p37 = scmp.ne.s32.totalorder %s29, %s32
      %p38 = scmp.eq.s32.totalorder %s19, 0
      %p39 = por %p37, %p38
      %p40 = scmp.ne.s32.totalorder %s29, %s32
      %p41 = scmp.eq.s32.totalorder %s24, 1
      %p42 = por %p40, %p41
      %p43 = scmp.ne.s32.totalorder %s32, %s33
      %p44 = scmp.eq.s32.totalorder %s24, 0
      %p45 = por %p43, %p44
      %p46 = scmp.ne.s32.totalorder %s32, %s33
      %p47 = scmp.eq.s32.totalorder %s25, 1
      %p48 = por %p46, %p47
      %p50 = scmp.ne.s32.totalorder %s33, %s49
      %p51 = scmp.eq.s32.totalorder %s25, 0
      %p52 = por %p50, %p51
      %s54 = sadd.s32 %s53, 1
      %p57 = scmp.eq.s32.totalorder %s19, 1
      %p58 = scmp.ne.s32.totalorder %s53, %s55
      %p59 = scmp.eq.s32.totalorder %s19, 0
      %p60 = por %p58, %p59
      %p61 = scmp.ne.s32.totalorder %s53, %s55
      %p62 = scmp.eq.s32.totalorder %s24, 1
      %p63 = por %p61, %p62
      %p64 = scmp.ne.s32.totalorder %s55, %s56
      %p65 = scmp.eq.s32.totalorder %s24, 0
      %p66 = por %p64, %p65
      %p67 = scmp.ne.s32.totalorder %s55, %s56
      %p68 = scmp.eq.s32.totalorder %s25, 1
      %p69 = por %p67, %p68
      %p71 = scmp.ne.s32.totalorder %s56, %s70
      %p72 = scmp.eq.s32.totalorder %s25, 0
      %p73 = por %p71, %p72
      %s75 = sadd.s32 %s74, 1
      %p78 = scmp.eq.s32.totalorder %s19, 1
      %p79 = scmp.ne.s32.totalorder %s74, %s76
      %p80 = scmp.eq.s32.totalorder %s19, 0
      %p81 = por %p79, %p80
      %p82 = scmp.ne.s32.totalorder %s74, %s76
      %p83 = scmp.eq.s32.totalorder %s24, 1
      %p84 = por %p82, %p83
      %p85 = scmp.ne.s32.totalorder %s76, %s77
      %p86 = scmp.eq.s32.totalorder %s24, 0
      %p87 = por %p85, %p86
      %p88 = scmp.ne.s32.totalorder %s76, %s77
      %p89 = scmp.eq.s32.totalorder %s25, 1
      %p90 = por %p88, %p89
      %p92 = scmp.ne.s32.totalorder %s77, %s91
      %p93 = scmp.eq.s32.totalorder %s25, 0
      %p94 = por %p92, %p93
      %s96 = sadd.s32 %s95, 1
      %p99 = scmp.eq.s32.totalorder %s19, 1
      %p100 = scmp.ne.s32.totalorder %s95, %s97
      %p101 = scmp.eq.s32.totalorder %s19, 0
      %p102 = por %p100, %p101
      %p103 = scmp.ne.s32.totalorder %s95, %s97
      %p104 = scmp.eq.s32.totalorder %s24, 1
      %p105 = por %p103, %p104
      %p106 = scmp.ne.s32.totalorder %s97, %s98
      %p107 = scmp.eq.s32.totalorder %s24, 0
      %p108 = por %p106, %p107
      %p109 = scmp.ne.s32.totalorder %s97, %s98
      %p110 = scmp.eq.s32.totalorder %s25, 1
      %p111 = por %p109, %p110
      %p113 = scmp.ne.s32.totalorder %s98, %s112
      %p114 = scmp.eq.s32.totalorder %s25, 0
      %p115 = por %p113, %p114
      %s117 = sadd.s32 %s116, 1
      %p120 = scmp.eq.s32.totalorder %s19, 1
      %p121 = scmp.ne.s32.totalorder %s116, %s118
      %p122 = scmp.eq.s32.totalorder %s19, 0
      %p123 = por %p121, %p122
      %p124 = scmp.ne.s32.totalorder %s116, %s118
      %p125 = scmp.eq.s32.totalorder %s24, 1
      %p126 = por %p124, %p125
      %p127 = scmp.ne.s32.totalorder %s118, %s119
      %p128 = scmp.eq.s32.totalorder %s24, 0
      %p129 = por %p127, %p128
      %p130 = scmp.ne.s32.totalorder %s118, %s119
      %p131 = scmp.eq.s32.totalorder %s25, 1
      %p132 = por %p130, %p131
      %p134 = scmp.ne.s32.totalorder %s119, %s133
      %p135 = scmp.eq.s32.totalorder %s25, 0
      %p136 = por %p134, %p135
      %s137 = ssub.s32 %s19, %s26
      %p138 = scmp.eq.s32.totalorder %s137, 0
      %s140 = sadd.s32 %s139, 1
      %s141 = scalar_select %p138, %s139, %s140
      %p144 = pneg %p138
      %p145 = scmp.eq.s32.totalorder %s19, 1
      %p146 = por %p144, %p145
      %p147 = scmp.ne.s32.totalorder %s139, %s142
      %p148 = scmp.eq.s32.totalorder %s19, 0
      %p149 = por %p147, %p148
      %p150 = scmp.ne.s32.totalorder %s139, %s142
      %p151 = scmp.eq.s32.totalorder %s24, 1
      %p152 = por %p150, %p151
      %p153 = scmp.ne.s32.totalorder %s142, %s143
      %p154 = scmp.eq.s32.totalorder %s24, 0
      %p155 = por %p153, %p154
      %p156 = scmp.ne.s32.totalorder %s142, %s143
      %p157 = scmp.eq.s32.totalorder %s25, 1
      %p158 = por %p156, %p157
      %p160 = scmp.ne.s32.totalorder %s143, %s159
      %p161 = scmp.eq.s32.totalorder %s25, 0
      %p162 = por %p160, %p161
      %p163 = scmp.le.s32.totalorder 1, %s19
      %p164 = scmp.lt.s32.totalorder %s19, 3
      %p165 = pnand %p163, %p164
      %p166 = pneg %p165
      // Predicated region
      $region9: #{tpu_custom_call.1} parent=5 // pred_check
        _
      $region10: #{tpu_custom_call.1} parent=5 // pred_check_branch
        %168 = sbr.rel (%p165) target = $region12
      $region11: #{tpu_custom_call.1} parent=5 // pred_region
        %s169 = ssub.s32 %s19, 1
        // Predicated region
        $region13: #{tpu_custom_call.1} parent=11 // pred_check
          %p170 = pneg %p66
        $region14: #{tpu_custom_call.1} parent=11 // pred_check_branch
          %172 = sbr.rel (%p170) target = $region16
        $region15: #{tpu_custom_call.1} parent=11 // pred_region
          %s174 = ssub.s32 1024, 1024
          %175 = vsyncadd [#allocation6], %s174
          %s176 = sshll.u32 [#allocation5], 4
          %s177 = int_to_ptr.vmem [resolvable:$true] %s176
          %182 = dma.hbm_to_vmem [thread:$0]  %s1, 1024, %s177, [#allocation6], 256, 256, 16
        $region16: #{tpu_custom_call.1} parent=11 // pred_fallthru
          _
        // Predicated region
        $region17: #{tpu_custom_call.1} parent=11 // pred_check
          %p183 = pneg %p87
        $region18: #{tpu_custom_call.1} parent=11 // pred_check_branch
          %185 = sbr.rel (%p183) target = $region20
        $region19: #{tpu_custom_call.1} parent=11 // pred_region
          %s187 = ssub.s32 512, 512
          %188 = vsyncadd [#allocation6], %s187
          %s189 = sshll.u32 [#allocation7], 4
          %s190 = int_to_ptr.vmem [resolvable:$true] %s189
          %195 = dma.hbm_to_vmem [thread:$0]  %s2, 512, %s190, [#allocation6], 256, 256, 16
        $region20: #{tpu_custom_call.1} parent=11 // pred_fallthru
          _
        // Predicated region
        $region21: #{tpu_custom_call.1} parent=11 // pred_check
          %p196 = pneg %p108
        $region22: #{tpu_custom_call.1} parent=11 // pred_check_branch
          %198 = sbr.rel (%p196) target = $region24
        $region23: #{tpu_custom_call.1} parent=11 // pred_region
          %s200 = ssub.s32 256, 256
          %201 = vsyncadd [#allocation9], %s200
          %s202 = sshll.u32 [#allocation8], 4
          %s203 = int_to_ptr.vmem [resolvable:$true] %s202
          %208 = dma.hbm_to_vmem [thread:$0]  %s3, 256, %s203, [#allocation9], 128, 128, 8
        $region24: #{tpu_custom_call.1} parent=11 // pred_fallthru
          _
        // Predicated region
        $region25: #{tpu_custom_call.1} parent=11 // pred_check
          %p209 = pneg %p129
        $region26: #{tpu_custom_call.1} parent=11 // pred_check_branch
          %211 = sbr.rel (%p209) target = $region28
        $region27: #{tpu_custom_call.1} parent=11 // pred_region
          _
        $region28: #{tpu_custom_call.1} parent=11 // pred_fallthru
          _
      $region12: #{tpu_custom_call.1} parent=5 // pred_fallthru
        _
      %p212 = scmp.lt.s32.totalorder %s19, 2
      // Predicated region
      $region29: #{tpu_custom_call.1} parent=5 // pred_check
        %p213 = pneg %p212
      $region30: #{tpu_custom_call.1} parent=5 // pred_check_branch
        %215 = sbr.rel (%p213) target = $region32
      $region31: #{tpu_custom_call.1} parent=5 // pred_region
        // Predicated region
        $region33: #{tpu_custom_call.1} parent=31 // pred_check
          %p216 = pneg %p39
        $region34: #{tpu_custom_call.1} parent=31 // pred_check_branch
          %218 = sbr.rel (%p216) target = $region36
        $region35: #{tpu_custom_call.1} parent=31 // pred_region
          %s219 = sand.u32 %s29, 1
          %s220 = scalar_lea.sflag [#allocation3], %s219
          %s221 = sand.u32 %s29, 1
          %s222 = smul.addr %s221, 64
          %s223 = scalar_lea.vmem [#allocation2], %s222
          %s224 = smul.u32 4, %s19
          %s226 = ssub.s32 1024, 1024
          %227 = vsyncadd %s220, %s226
          %s228 = smul.addr %s224, 2
          %s229 = smul.addr %s228, 128
          %s230 = scalar_lea.hbm %s0, %s229
          %s231 = sshll.u32 %s223, 4
          %s232 = int_to_ptr.vmem [resolvable:$true] %s231
          %237 = dma.hbm_to_vmem [thread:$0]  %s230, 1024, %s232, %s220, 128, 128, 8
        $region36: #{tpu_custom_call.1} parent=31 // pred_fallthru
          _
      $region32: #{tpu_custom_call.1} parent=5 // pred_fallthru
        _
      %p238 = scmp.le.s32.totalorder 1, %s19
      %p239 = scmp.lt.s32.totalorder %s19, 3
      %p240 = pnand %p238, %p239
      %p241 = pneg %p240
      // Predicated region
      $region37: #{tpu_custom_call.1} parent=5 // pred_check
        _
      $region38: #{tpu_custom_call.1} parent=5 // pred_check_branch
        %243 = sbr.rel (%p240) target = $region40
      $region39: #{tpu_custom_call.1} parent=5 // pred_region
        %s244 = ssub.s32 %s19, 1
        %s245 = sand.u32 %s32, 1
        %s246 = scalar_lea.sflag [#allocation3], %s245
        %s247 = sand.u32 %s32, 1
        %s248 = smul.addr %s247, 64
        %s249 = scalar_lea.vmem [#allocation2], %s248
        // Predicated region
        $region41: #{tpu_custom_call.1} parent=39 // pred_check
          %p250 = pneg %p45
        $region42: #{tpu_custom_call.1} parent=39 // pred_check_branch
          %252 = sbr.rel (%p250) target = $region44
        $region43: #{tpu_custom_call.1} parent=39 // pred_region
          %253 = dma.done %s246, 1024
        $region44: #{tpu_custom_call.1} parent=39 // pred_fallthru
          _
        // Predicated region
        $region45: #{tpu_custom_call.1} parent=39 // pred_check
          %p254 = pneg %p66
        $region46: #{tpu_custom_call.1} parent=39 // pred_check_branch
          %256 = sbr.rel (%p254) target = $region48
        $region47: #{tpu_custom_call.1} parent=39 // pred_region
          %257 = dma.done [#allocation6], 1024
        $region48: #{tpu_custom_call.1} parent=39 // pred_fallthru
          _
        // Predicated region
        $region49: #{tpu_custom_call.1} parent=39 // pred_check
          %p258 = pneg %p87
        $region50: #{tpu_custom_call.1} parent=39 // pred_check_branch
          %260 = sbr.rel (%p258) target = $region52
        $region51: #{tpu_custom_call.1} parent=39 // pred_region
          %261 = dma.done [#allocation6], 512
        $region52: #{tpu_custom_call.1} parent=39 // pred_fallthru
          _
        // Predicated region
        $region53: #{tpu_custom_call.1} parent=39 // pred_check
          %p262 = pneg %p108
        $region54: #{tpu_custom_call.1} parent=39 // pred_check_branch
          %264 = sbr.rel (%p262) target = $region56
        $region55: #{tpu_custom_call.1} parent=39 // pred_region
          %265 = dma.done [#allocation9], 256
        $region56: #{tpu_custom_call.1} parent=39 // pred_fallthru
          _
        %s266 = sand.u32 %s32, 1
        %s267 = scalar_lea.sflag [#allocation3], %s266
        %s268 = sand.u32 %s32, 1
        %s269 = smul.addr %s268, 64
        %s270 = scalar_lea.vmem [#allocation2], %s269
        %p271 = pneg %p45
        %p272 = pneg %p42
        %p273 = pneg %p66
        %p274 = pneg %p63
        %p275 = pneg %p87
        %p276 = pneg %p84
        %p277 = pneg %p108
        %p278 = pneg %p105
        %p279 = pneg %p129
        %p280 = pneg %p126
        %p281 = pneg %p155
        %p282 = pneg %p152
        %s283 = sand.u32 %s142, 1
        %s284 = scalar_lea.sflag [#allocation4], %s283
        %s285 = sand.u32 %s142, 1
        %s286 = smul.addr %s285, 64
        %s287 = scalar_lea.vmem [#allocation10], %s286
        %s288 = smul.u32 4, %s24
        %s289 = smul.u32 4, %s24
        %v290 = vld [vmem:[%s249] sm:$0xff]
        %v291 = vld [vmem:[%s249 + $0x8] sm:$0xff]
        %v292 = vld [vmem:[%s249 + $0x10] sm:$0xff]
        %v293 = vld [vmem:[%s249 + $0x18] sm:$0xff]
        %v294 = vld [vmem:[%s249 + $0x20] sm:$0xff]
        %v295 = vld [vmem:[%s249 + $0x28] sm:$0xff]
        %v296 = vld [vmem:[%s249 + $0x30] sm:$0xff]
        %v297 = vld [vmem:[%s249 + $0x38] sm:$0xff]
        %v298 = vld [vmem:[#allocation5] sm:$0xff]
        %v299 = vld [vmem:[#allocation5 + $0x8] sm:$0xff]
        %v300 = vld [vmem:[#allocation5 + $0x10] sm:$0xff]
        %v301 = vld [vmem:[#allocation5 + $0x18] sm:$0xff]
        %v302 = vld [vmem:[#allocation5 + $0x20] sm:$0xff]
        %v303 = vld [vmem:[#allocation5 + $0x28] sm:$0xff]
        %v304 = vld [vmem:[#allocation5 + $0x30] sm:$0xff]
        %v305 = vld [vmem:[#allocation5 + $0x38] sm:$0xff]
        %vm306 = vcmask 261120
        %v308 = vsel %vm306, %v290, 0
        %v311 = vsel %vm306, %v291, 0
        %v314 = vsel %vm306, %v292, 0
        %v317 = vsel %vm306, %v293, 0
        %v320 = vsel %vm306, %v294, 0
        %v323 = vsel %vm306, %v295, 0
        %v326 = vsel %vm306, %v296, 0
        %v329 = vsel %vm306, %v297, 0
        %331 = vmatprep.subr.mxu0 0.0
        %332 = vmatpush1.msra.mxu0 0.0
        %333 = vmatprep.subr.mxu0 0.0
        %334 = vmatpush1.msra.mxu0 0.0
        %335 = vmatprep.subr.mxu0 0.0
        %336 = vmatpush1.msra.mxu0 0.0
        %337 = vmatprep.subr.mxu0 0.0
        %338 = vmatpush1.msra.mxu0 0.0
        %339 = vmatprep.subr.mxu0 0.0
        %340 = vmatpush1.msra.mxu0 0.0
        %341 = vmatprep.subr.mxu0 0.0
        %342 = vmatpush1.msra.mxu0 0.0
        %343 = vmatprep.subr.mxu0 0.0
        %344 = vmatpush1.msra.mxu0 0.0
        %345 = vmatprep.subr.mxu0 0.0
        %346 = vmatpush1.msra.mxu0 0.0
        %347 = vmatprep.subr.mxu0 0.0
        %348 = vmatpush1.msra.mxu0 0.0
        %349 = vmatprep.subr.mxu0 0.0
        %350 = vmatpush1.msra.mxu0 0.0
        %351 = vmatprep.subr.mxu0 0.0
        %352 = vmatpush1.msra.mxu0 0.0
        %353 = vmatprep.subr.mxu0 0.0
        %354 = vmatpush1.msra.mxu0 0.0
        %355 = vmatprep.subr.mxu0 %v305
        %356 = vmatpush1.msra.mxu0 %v304
        %357 = vmatprep.subr.mxu0 %v303
        %358 = vmatpush1.msra.mxu0 %v302
        %359 = vmatprep.subr.mxu0 %v301
        %360 = vmatpush1.msra.mxu0 %v300
        %361 = vmatprep.subr.mxu0 %v299
        %362 = vmatpush1.msra.mxu0 %v298
        %363 = vmatprep.subr.mxu0 0.0
        %364 = vmatpush2.msra.mxu0 0.0
        %365 = vmatprep.subr.mxu0 0.0
        %366 = vmatpush2.msra.mxu0 0.0
        %367 = vmatprep.subr.mxu0 0.0
        %368 = vmatpush2.msra.mxu0 0.0
        %369 = vmatprep.subr.mxu0 0.0
        %370 = vmatpush2.msra.mxu0 0.0
        %371 = vmatprep.subr.mxu0 0.0
        %372 = vmatpush2.msra.mxu0 0.0
        %373 = vmatprep.subr.mxu0 0.0
        %374 = vmatpush2.msra.mxu0 0.0
        %375 = vmatprep.subr.mxu0 0.0
        %376 = vmatpush2.msra.mxu0 0.0
        %377 = vmatprep.subr.mxu0 0.0
        %378 = vmatpush2.msra.mxu0 0.0
        %379 = vmatprep.subr.mxu0 0.0
        %380 = vmatpush2.msra.mxu0 0.0
        %381 = vmatprep.subr.mxu0 0.0
        %382 = vmatpush2.msra.mxu0 0.0
        %383 = vmatprep.subr.mxu0 0.0
        %384 = vmatpush2.msra.mxu0 0.0
        %385 = vmatprep.subr.mxu0 0.0
        %386 = vmatpush2.msra.mxu0 0.0
        %387 = vmatprep.subr.mxu0 0.0
        %388 = vmatpush2.msra.mxu0 0.0
        %389 = vmatprep.subr.mxu0 0.0
        %390 = vmatpush2.msra.mxu0 0.0
        %391 = vmatprep.subr.mxu0 0.0
        %392 = vmatpush2.msra.mxu0 0.0
        %393 = vmatprep.subr.mxu0 0.0
        %394 = vmatpush2.msra.mxu0 0.0
        %395 = vmatprep.mubr.f32.mxu0 0.0
        %396 = vmatmul.mubr.f32.gmra.mxu0 %v308
        %v397 = vpop.f32.mrf.mxu0
        %v398 = vadd.f32 0.0, %v397
        %v399 = vpop.f32.mrf.mxu0
        %v400 = vadd.f32 0.0, %v399
        %401 = vmatprep.mubr.f32.mxu0 0.0
        %402 = vmatmul.mubr.f32.gmra.mxu0 %v311
        %v403 = vpop.f32.mrf.mxu0
        %v404 = vadd.f32 0.0, %v403
        %v405 = vpop.f32.mrf.mxu0
        %v406 = vadd.f32 0.0, %v405
        %407 = vmatprep.mubr.f32.mxu0 0.0
        %408 = vmatmul.mubr.f32.gmra.mxu0 %v314
        %v409 = vpop.f32.mrf.mxu0
        %v410 = vadd.f32 0.0, %v409
        %v411 = vpop.f32.mrf.mxu0
        %v412 = vadd.f32 0.0, %v411
        %413 = vmatprep.mubr.f32.mxu0 0.0
        %414 = vmatmul.mubr.f32.gmra.mxu0 %v317
        %v415 = vpop.f32.mrf.mxu0
        %v416 = vadd.f32 0.0, %v415
        %v417 = vpop.f32.mrf.mxu0
        %v418 = vadd.f32 0.0, %v417
        %419 = vmatprep.mubr.f32.mxu0 0.0
        %420 = vmatmul.mubr.f32.gmra.mxu0 %v320
        %v421 = vpop.f32.mrf.mxu0
        %v422 = vadd.f32 0.0, %v421
        %v423 = vpop.f32.mrf.mxu0
        %v424 = vadd.f32 0.0, %v423
        %425 = vmatprep.mubr.f32.mxu0 0.0
        %426 = vmatmul.mubr.f32.gmra.mxu0 %v323
        %v427 = vpop.f32.mrf.mxu0
        %v428 = vadd.f32 0.0, %v427
        %v429 = vpop.f32.mrf.mxu0
        %v430 = vadd.f32 0.0, %v429
        %431 = vmatprep.mubr.f32.mxu0 0.0
        %432 = vmatmul.mubr.f32.gmra.mxu0 %v326
        %v433 = vpop.f32.mrf.mxu0
        %v434 = vadd.f32 0.0, %v433
        %v435 = vpop.f32.mrf.mxu0
        %v436 = vadd.f32 0.0, %v435
        %437 = vmatprep.mubr.f32.mxu0 0.0
        %438 = vmatmul.mubr.f32.gmra.mxu0 %v329
        %v439 = vpop.f32.mrf.mxu0
        %v440 = vadd.f32 0.0, %v439
        %v441 = vpop.f32.mrf.mxu0
        %v442 = vadd.f32 0.0, %v441
        %443 = vdwg.mxu0
        %v444 = vld [vmem:[#allocation7] sm:$0xff]
        %v445 = vld [vmem:[#allocation7 + $0x8] sm:$0xff]
        %v446 = vld [vmem:[#allocation7 + $0x10] sm:$0xff]
        %v447 = vld [vmem:[#allocation7 + $0x18] sm:$0xff]
        %v448 = vmul.f32 %v444, %v398
        %v449 = vmul.f32 %v445, %v400
        %v450 = vmul.f32 %v446, %v404
        %v451 = vmul.f32 %v447, %v406
        %v452 = vmul.f32 %v444, %v410
        %v453 = vmul.f32 %v445, %v412
        %v454 = vmul.f32 %v446, %v416
        %v455 = vmul.f32 %v447, %v418
        %v456 = vmul.f32 %v444, %v422
        %v457 = vmul.f32 %v445, %v424
        %v458 = vmul.f32 %v446, %v428
        %v459 = vmul.f32 %v447, %v430
        %v460 = vmul.f32 %v444, %v434
        %v461 = vmul.f32 %v445, %v436
        %v462 = vmul.f32 %v446, %v440
        %v463 = vmul.f32 %v447, %v442
        %v464 = vld [vmem:[#allocation8] sm:$0xff]
        %v465 = vld [vmem:[#allocation8 + $0x8] sm:$0xff]
        %vm466 = vcmask 130048
        %v468 = vsel %vm466, %v464, 0
        %v471 = vsel %vm466, %v465, 0
        %473 = vmatprep.subr.mxu0 0.0
        %474 = vmatpush1.msra.mxu0 0.0
        %475 = vmatprep.subr.mxu0 0.0
        %476 = vmatpush1.msra.mxu0 0.0
        %477 = vmatprep.subr.mxu0 0.0
        %478 = vmatpush1.msra.mxu0 0.0
        %479 = vmatprep.subr.mxu0 0.0
        %480 = vmatpush1.msra.mxu0 0.0
        %481 = vmatprep.subr.mxu0 0.0
        %482 = vmatpush1.msra.mxu0 0.0
        %483 = vmatprep.subr.mxu0 0.0
        %484 = vmatpush1.msra.mxu0 0.0
        %485 = vmatprep.subr.mxu0 0.0
        %486 = vmatpush1.msra.mxu0 0.0
        %487 = vmatprep.subr.mxu0 0.0
        %488 = vmatpush1.msra.mxu0 0.0
        %489 = vmatprep.subr.mxu0 0.0
        %490 = vmatpush1.msra.mxu0 0.0
        %491 = vmatprep.subr.mxu0 0.0
        %492 = vmatpush1.msra.mxu0 0.0
        %493 = vmatprep.subr.mxu0 0.0
        %494 = vmatpush1.msra.mxu0 0.0
        %495 = vmatprep.subr.mxu0 0.0
        %496 = vmatpush1.msra.mxu0 0.0
        %497 = vmatprep.subr.mxu0 0.0
        %498 = vmatpush1.msra.mxu0 0.0
        %499 = vmatprep.subr.mxu0 0.0
        %500 = vmatpush1.msra.mxu0 0.0
        %501 = vmatprep.subr.mxu0 0.0
        %502 = vmatpush1.msra.mxu0 %v451
        %503 = vmatprep.subr.mxu0 0.0
        %504 = vmatpush1.msra.mxu0 %v449
        %505 = vmatprep.subr.mxu0 0.0
        %506 = vmatpush2.msra.mxu0 0.0
        %507 = vmatprep.subr.mxu0 0.0
        %508 = vmatpush2.msra.mxu0 0.0
        %509 = vmatprep.subr.mxu0 0.0
        %510 = vmatpush2.msra.mxu0 0.0
        %511 = vmatprep.subr.mxu0 0.0
        %512 = vmatpush2.msra.mxu0 0.0
        %513 = vmatprep.subr.mxu0 0.0
        %514 = vmatpush2.msra.mxu0 0.0
        %515 = vmatprep.subr.mxu0 0.0
        %516 = vmatpush2.msra.mxu0 0.0
        %517 = vmatprep.subr.mxu0 0.0
        %518 = vmatpush2.msra.mxu0 0.0
        %519 = vmatprep.subr.mxu0 0.0
        %520 = vmatpush2.msra.mxu0 0.0
        %521 = vmatprep.subr.mxu0 0.0
        %522 = vmatpush2.msra.mxu0 0.0
        %523 = vmatprep.subr.mxu0 0.0
        %524 = vmatpush2.msra.mxu0 0.0
        %525 = vmatprep.subr.mxu0 0.0
        %526 = vmatpush2.msra.mxu0 0.0
        %527 = vmatprep.subr.mxu0 0.0
        %528 = vmatpush2.msra.mxu0 0.0
        %529 = vmatprep.subr.mxu0 0.0
        %530 = vmatpush2.msra.mxu0 0.0
        %531 = vmatprep.subr.mxu0 0.0
        %532 = vmatpush2.msra.mxu0 0.0
        %533 = vmatprep.subr.mxu0 0.0
        %534 = vmatpush2.msra.mxu0 0.0
        %535 = vmatprep.subr.mxu0 0.0
        %536 = vmatpush2.msra.mxu0 0.0
        %537 = vmatprep.mubr.f32.mxu0 0.0
        %538 = vmatmul.mubr.f32.gmra.mxu0 %v468
        %v539 = vpop.f32.mrf.mxu0
        %v540 = vadd.f32 0.0, %v539
        %v541 = vpop.f32.mrf.mxu0
        %542 = vmatprep.mubr.f32.mxu0 0.0
        %543 = vmatmul.mubr.f32.gmra.mxu0 %v471
        %v544 = vpop.f32.mrf.mxu0
        %v545 = vadd.f32 0.0, %v544
        %v546 = vpop.f32.mrf.mxu0
        %547 = vdwg.mxu0
        %548 = vmatprep.subr.mxu0 0.0
        %549 = vmatpush1.msra.mxu0 0.0
        %550 = vmatprep.subr.mxu0 0.0
        %551 = vmatpush1.msra.mxu0 0.0
        %552 = vmatprep.subr.mxu0 0.0
        %553 = vmatpush1.msra.mxu0 0.0
        %554 = vmatprep.subr.mxu0 0.0
        %555 = vmatpush1.msra.mxu0 0.0
        %556 = vmatprep.subr.mxu0 0.0
        %557 = vmatpush1.msra.mxu0 0.0
        %558 = vmatprep.subr.mxu0 0.0
        %559 = vmatpush1.msra.mxu0 0.0
        %560 = vmatprep.subr.mxu0 0.0
        %561 = vmatpush1.msra.mxu0 0.0
        %562 = vmatprep.subr.mxu0 0.0
        %563 = vmatpush1.msra.mxu0 0.0
        %564 = vmatprep.subr.mxu0 0.0
        %565 = vmatpush1.msra.mxu0 0.0
        %566 = vmatprep.subr.mxu0 0.0
        %567 = vmatpush1.msra.mxu0 0.0
        %568 = vmatprep.subr.mxu0 0.0
        %569 = vmatpush1.msra.mxu0 0.0
        %570 = vmatprep.subr.mxu0 0.0
        %571 = vmatpush1.msra.mxu0 0.0
        %572 = vmatprep.subr.mxu0 0.0
        %573 = vmatpush1.msra.mxu0 0.0
        %574 = vmatprep.subr.mxu0 0.0
        %575 = vmatpush1.msra.mxu0 0.0
        %576 = vmatprep.subr.mxu0 0.0
        %577 = vmatpush1.msra.mxu0 %v455
        %578 = vmatprep.subr.mxu0 0.0
        %579 = vmatpush1.msra.mxu0 %v453
        %580 = vmatprep.subr.mxu0 0.0
        %581 = vmatpush2.msra.mxu0 0.0
        %582 = vmatprep.subr.mxu0 0.0
        %583 = vmatpush2.msra.mxu0 0.0
        %584 = vmatprep.subr.mxu0 0.0
        %585 = vmatpush2.msra.mxu0 0.0
        %586 = vmatprep.subr.mxu0 0.0
        %587 = vmatpush2.msra.mxu0 0.0
        %588 = vmatprep.subr.mxu0 0.0
        %589 = vmatpush2.msra.mxu0 0.0
        %590 = vmatprep.subr.mxu0 0.0
        %591 = vmatpush2.msra.mxu0 0.0
        %592 = vmatprep.subr.mxu0 0.0
        %593 = vmatpush2.msra.mxu0 0.0
        %594 = vmatprep.subr.mxu0 0.0
        %595 = vmatpush2.msra.mxu0 0.0
        %596 = vmatprep.subr.mxu0 0.0
        %597 = vmatpush2.msra.mxu0 0.0
        %598 = vmatprep.subr.mxu0 0.0
        %599 = vmatpush2.msra.mxu0 0.0
        %600 = vmatprep.subr.mxu0 0.0
        %601 = vmatpush2.msra.mxu0 0.0
        %602 = vmatprep.subr.mxu0 0.0
        %603 = vmatpush2.msra.mxu0 0.0
        %604 = vmatprep.subr.mxu0 0.0
        %605 = vmatpush2.msra.mxu0 0.0
        %606 = vmatprep.subr.mxu0 0.0
        %607 = vmatpush2.msra.mxu0 0.0
        %608 = vmatprep.subr.mxu0 0.0
        %609 = vmatpush2.msra.mxu0 0.0
        %610 = vmatprep.subr.mxu0 0.0
        %611 = vmatpush2.msra.mxu0 0.0
        %612 = vmatprep.mubr.f32.mxu0 0.0
        %613 = vmatmul.mubr.f32.gmra.mxu0 %v468
        %v614 = vpop.f32.mrf.mxu0
        %v615 = vadd.f32 0.0, %v614
        %v616 = vpop.f32.mrf.mxu0
        %617 = vmatprep.mubr.f32.mxu0 0.0
        %618 = vmatmul.mubr.f32.gmra.mxu0 %v471
        %v619 = vpop.f32.mrf.mxu0
        %v620 = vadd.f32 0.0, %v619
        %v621 = vpop.f32.mrf.mxu0
        %622 = vdwg.mxu0
        %623 = vmatprep.subr.mxu0 0.0
        %624 = vmatpush1.msra.mxu0 0.0
        %625 = vmatprep.subr.mxu0 0.0
        %626 = vmatpush1.msra.mxu0 0.0
        %627 = vmatprep.subr.mxu0 0.0
        %628 = vmatpush1.msra.mxu0 0.0
        %629 = vmatprep.subr.mxu0 0.0
        %630 = vmatpush1.msra.mxu0 0.0
        %631 = vmatprep.subr.mxu0 0.0
        %632 = vmatpush1.msra.mxu0 0.0
        %633 = vmatprep.subr.mxu0 0.0
        %634 = vmatpush1.msra.mxu0 0.0
        %635 = vmatprep.subr.mxu0 0.0
        %636 = vmatpush1.msra.mxu0 0.0
        %637 = vmatprep.subr.mxu0 0.0
        %638 = vmatpush1.msra.mxu0 0.0
        %639 = vmatprep.subr.mxu0 0.0
        %640 = vmatpush1.msra.mxu0 0.0
        %641 = vmatprep.subr.mxu0 0.0
        %642 = vmatpush1.msra.mxu0 0.0
        %643 = vmatprep.subr.mxu0 0.0
        %644 = vmatpush1.msra.mxu0 0.0
        %645 = vmatprep.subr.mxu0 0.0
        %646 = vmatpush1.msra.mxu0 0.0
        %647 = vmatprep.subr.mxu0 0.0
        %648 = vmatpush1.msra.mxu0 0.0
        %649 = vmatprep.subr.mxu0 0.0
        %650 = vmatpush1.msra.mxu0 0.0
        %651 = vmatprep.subr.mxu0 0.0
        %652 = vmatpush1.msra.mxu0 %v459
        %653 = vmatprep.subr.mxu0 0.0
        %654 = vmatpush1.msra.mxu0 %v457
        %655 = vmatprep.subr.mxu0 0.0
        %656 = vmatpush2.msra.mxu0 0.0
        %657 = vmatprep.subr.mxu0 0.0
        %658 = vmatpush2.msra.mxu0 0.0
        %659 = vmatprep.subr.mxu0 0.0
        %660 = vmatpush2.msra.mxu0 0.0
        %661 = vmatprep.subr.mxu0 0.0
        %662 = vmatpush2.msra.mxu0 0.0
        %663 = vmatprep.subr.mxu0 0.0
        %664 = vmatpush2.msra.mxu0 0.0
        %665 = vmatprep.subr.mxu0 0.0
        %666 = vmatpush2.msra.mxu0 0.0
        %667 = vmatprep.subr.mxu0 0.0
        %668 = vmatpush2.msra.mxu0 0.0
        %669 = vmatprep.subr.mxu0 0.0
        %670 = vmatpush2.msra.mxu0 0.0
        %671 = vmatprep.subr.mxu0 0.0
        %672 = vmatpush2.msra.mxu0 0.0
        %673 = vmatprep.subr.mxu0 0.0
        %674 = vmatpush2.msra.mxu0 0.0
        %675 = vmatprep.subr.mxu0 0.0
        %676 = vmatpush2.msra.mxu0 0.0
        %677 = vmatprep.subr.mxu0 0.0
        %678 = vmatpush2.msra.mxu0 0.0
        %679 = vmatprep.subr.mxu0 0.0
        %680 = vmatpush2.msra.mxu0 0.0
        %681 = vmatprep.subr.mxu0 0.0
        %682 = vmatpush2.msra.mxu0 0.0
        %683 = vmatprep.subr.mxu0 0.0
        %684 = vmatpush2.msra.mxu0 0.0
        %685 = vmatprep.subr.mxu0 0.0
        %686 = vmatpush2.msra.mxu0 0.0
        %687 = vmatprep.mubr.f32.mxu0 0.0
        %688 = vmatmul.mubr.f32.gmra.mxu0 %v468
        %v689 = vpop.f32.mrf.mxu0
        %v690 = vadd.f32 0.0, %v689
        %v691 = vpop.f32.mrf.mxu0
        %692 = vmatprep.mubr.f32.mxu0 0.0
        %693 = vmatmul.mubr.f32.gmra.mxu0 %v471
        %v694 = vpop.f32.mrf.mxu0
        %v695 = vadd.f32 0.0, %v694
        %v696 = vpop.f32.mrf.mxu0
        %697 = vdwg.mxu0
        %698 = vmatprep.subr.mxu0 0.0
        %699 = vmatpush1.msra.mxu0 0.0
        %700 = vmatprep.subr.mxu0 0.0
        %701 = vmatpush1.msra.mxu0 0.0
        %702 = vmatprep.subr.mxu0 0.0
        %703 = vmatpush1.msra.mxu0 0.0
        %704 = vmatprep.subr.mxu0 0.0
        %705 = vmatpush1.msra.mxu0 0.0
        %706 = vmatprep.subr.mxu0 0.0
        %707 = vmatpush1.msra.mxu0 0.0
        %708 = vmatprep.subr.mxu0 0.0
        %709 = vmatpush1.msra.mxu0 0.0
        %710 = vmatprep.subr.mxu0 0.0
        %711 = vmatpush1.msra.mxu0 0.0
        %712 = vmatprep.subr.mxu0 0.0
        %713 = vmatpush1.msra.mxu0 0.0
        %714 = vmatprep.subr.mxu0 0.0
        %715 = vmatpush1.msra.mxu0 0.0
        %716 = vmatprep.subr.mxu0 0.0
        %717 = vmatpush1.msra.mxu0 0.0
        %718 = vmatprep.subr.mxu0 0.0
        %719 = vmatpush1.msra.mxu0 0.0
        %720 = vmatprep.subr.mxu0 0.0
        %721 = vmatpush1.msra.mxu0 0.0
        %722 = vmatprep.subr.mxu0 0.0
        %723 = vmatpush1.msra.mxu0 0.0
        %724 = vmatprep.subr.mxu0 0.0
        %725 = vmatpush1.msra.mxu0 0.0
        %726 = vmatprep.subr.mxu0 0.0
        %727 = vmatpush1.msra.mxu0 %v463
        %728 = vmatprep.subr.mxu0 0.0
        %729 = vmatpush1.msra.mxu0 %v461
        %730 = vmatprep.subr.mxu0 0.0
        %731 = vmatpush2.msra.mxu0 0.0
        %732 = vmatprep.subr.mxu0 0.0
        %733 = vmatpush2.msra.mxu0 0.0
        %734 = vmatprep.subr.mxu0 0.0
        %735 = vmatpush2.msra.mxu0 0.0
        %736 = vmatprep.subr.mxu0 0.0
        %737 = vmatpush2.msra.mxu0 0.0
        %738 = vmatprep.subr.mxu0 0.0
        %739 = vmatpush2.msra.mxu0 0.0
        %740 = vmatprep.subr.mxu0 0.0
        %741 = vmatpush2.msra.mxu0 0.0
        %742 = vmatprep.subr.mxu0 0.0
        %743 = vmatpush2.msra.mxu0 0.0
        %744 = vmatprep.subr.mxu0 0.0
        %745 = vmatpush2.msra.mxu0 0.0
        %746 = vmatprep.subr.mxu0 0.0
        %747 = vmatpush2.msra.mxu0 0.0
        %748 = vmatprep.subr.mxu0 0.0
        %749 = vmatpush2.msra.mxu0 0.0
        %750 = vmatprep.subr.mxu0 0.0
        %751 = vmatpush2.msra.mxu0 0.0
        %752 = vmatprep.subr.mxu0 0.0
        %753 = vmatpush2.msra.mxu0 0.0
        %754 = vmatprep.subr.mxu0 0.0
        %755 = vmatpush2.msra.mxu0 0.0
        %756 = vmatprep.subr.mxu0 0.0
        %757 = vmatpush2.msra.mxu0 0.0
        %758 = vmatprep.subr.mxu0 0.0
        %759 = vmatpush2.msra.mxu0 0.0
        %760 = vmatprep.subr.mxu0 0.0
        %761 = vmatpush2.msra.mxu0 0.0
        %762 = vmatprep.mubr.f32.mxu0 0.0
        %763 = vmatmul.mubr.f32.gmra.mxu0 %v468
        %v764 = vpop.f32.mrf.mxu0
        %v765 = vadd.f32 0.0, %v764
        %v766 = vpop.f32.mrf.mxu0
        %767 = vmatprep.mubr.f32.mxu0 0.0
        %768 = vmatmul.mubr.f32.gmra.mxu0 %v471
        %v769 = vpop.f32.mrf.mxu0
        %v770 = vadd.f32 0.0, %v769
        %v771 = vpop.f32.mrf.mxu0
        %772 = vdwg.mxu0
        %v773 = vadd.f32 %v448, %v540
        %v774 = vadd.f32 %v450, %v545
        %v775 = vadd.f32 %v452, %v615
        %v776 = vadd.f32 %v454, %v620
        %v777 = vadd.f32 %v456, %v690
        %v778 = vadd.f32 %v458, %v695
        %v779 = vadd.f32 %v460, %v765
        %v780 = vadd.f32 %v462, %v770
        %v781 = vld [vmem:[%s4] sm:$0x1]
        %v783 = vlaneseq
        %v784 = vshrl.u32 %v783, 7
        %v785 = vsub.s32 0, %v784
        %v786 = vrot.slane %v781, %v785
        %v788 = vadd.f32 %v773, %v786
        %v789 = vadd.f32 %v774, %v786
        %v790 = vadd.f32 %v775, %v786
        %v791 = vadd.f32 %v776, %v786
        %v792 = vadd.f32 %v777, %v786
        %v793 = vadd.f32 %v778, %v786
        %v794 = vadd.f32 %v779, %v786
        %v795 = vadd.f32 %v780, %v786
        %796 = vst [vmem:[%s287] sm:$0xff] %v788
        %797 = vst [vmem:[%s287 + $0x8] sm:$0xff] %v789
        %798 = vst [vmem:[%s287 + $0x10] sm:$0xff] %v790
        %799 = vst [vmem:[%s287 + $0x18] sm:$0xff] %v791
        %800 = vst [vmem:[%s287 + $0x20] sm:$0xff] %v792
        %801 = vst [vmem:[%s287 + $0x28] sm:$0xff] %v793
        %802 = vst [vmem:[%s287 + $0x30] sm:$0xff] %v794
        %803 = vst [vmem:[%s287 + $0x38] sm:$0xff] %v795
        %s804 = sand.u32 %s142, 1
        %s805 = scalar_lea.sflag [#allocation4], %s804
        %s806 = sand.u32 %s142, 1
        %s807 = smul.addr %s806, 64
        %s808 = scalar_lea.vmem [#allocation10], %s807
        // Predicated region
        $region57: #{tpu_custom_call.1} parent=39 // pred_check
          %p809 = pneg %p152
        $region58: #{tpu_custom_call.1} parent=39 // pred_check_branch
          %811 = sbr.rel (%p809) target = $region60
        $region59: #{tpu_custom_call.1} parent=39 // pred_region
          %s812 = smul.u32 4, %s24
          %s814 = ssub.s32 1024, 1024
          %815 = vsyncadd %s805, %s814
          %s816 = smul.addr %s812, 2
          %s817 = smul.addr %s816, 128
          %s818 = scalar_lea.hbm %s5, %s817
          %s819 = sshll.u32 %s808, 4
          %s820 = int_to_ptr.vmem [resolvable:$true] %s819
          %825 = dma.vmem_to_hbm [thread:$0]  %s820, 1024, %s818, %s805, 128, 128, 8
        $region60: #{tpu_custom_call.1} parent=39 // pred_fallthru
          _
      $region40: #{tpu_custom_call.1} parent=5 // pred_fallthru
        _
      %p826 = scmp.le.s32.totalorder 2, %s19
      // Predicated region
      $region61: #{tpu_custom_call.1} parent=5 // pred_check
        %p827 = pneg %p826
      $region62: #{tpu_custom_call.1} parent=5 // pred_check_branch
        %829 = sbr.rel (%p827) target = $region64
      $region63: #{tpu_custom_call.1} parent=5 // pred_region
        %s830 = ssub.s32 %s19, 2
        // Predicated region
        $region65: #{tpu_custom_call.1} parent=63 // pred_check
          %p831 = pneg %p158
        $region66: #{tpu_custom_call.1} parent=63 // pred_check_branch
          %833 = sbr.rel (%p831) target = $region68
        $region67: #{tpu_custom_call.1} parent=63 // pred_region
          %s834 = sand.u32 %s143, 1
          %s835 = scalar_lea.sflag [#allocation4], %s834
          %s836 = sand.u32 %s143, 1
          %s837 = smul.addr %s836, 64
          %s838 = scalar_lea.vmem [#allocation10], %s837
          %839 = dma.done %s835, 1024
        $region68: #{tpu_custom_call.1} parent=63 // pred_fallthru
          _
      $region64: #{tpu_custom_call.1} parent=5 // pred_fallthru
        _
    $region6: #{tpu_custom_call.1} parent=1 // loop_footer
      %s23 = sadd.s32 1, %s19
    $region7: #{tpu_custom_call.1} parent=1 // loop_footer_branch
      %18 = sbr.rel target = $region3
    $region8: #{tpu_custom_call.1} parent=1 // loop_exit
      _
    %840 = vsyncpa [#allocation3], 1
    %s841 = scalar_lea.sflag [#allocation3], 1
    %842 = vsyncpa %s841, 1
    %843 = vsyncpa [#allocation6], 1
    %844 = vsyncpa [#allocation9], 1
    %845 = vsyncpa [#allocation4], 1
    %s846 = scalar_lea.sflag [#allocation4], 1
    %847 = vsyncpa %s846, 1

</llo_original>
